<compile_context>
chip_gen: v5e
topology: v5e:2x2
jax: 0.10.0
libtpu: 0.0.40
codegen_flags: <defaults>
</compile_context>

<pallas_src>
import functools

import jax
import jax.numpy as jnp
from jax.experimental import pallas as pl
from jax.experimental.pallas import tpu as pltpu


def _round_up(v, m):
    return (v + m - 1) // m * m


def _cyclic_pad_kernel(n, L, x_ref, o_ref):
    # x_ref: (TR, L) block, o_ref: (TR, L + 2n) block; n, L are static ints.
    # Three stores exactly tile each output row.  Pads are written from ref
    # slices so they lower to narrow streamed vld -> vst.msk on n lanes only.
    o_ref[:, n:n + L] = x_ref[...]        # body (lane shift by n)
    o_ref[:, :n] = x_ref[:, L - n:]       # left pad: wrap from the end
    o_ref[:, L + n:] = x_ref[:, :n]       # right pad: wrap from the start


# Per-grid-step VMEM budget for the double-buffered (input + output) block
# pair.  ~2-4 MiB tiles already sit at ~85%+ of the HBM roofline; larger tiles
# only cost pipelining granularity, megacore balance, and VMEM headroom
# (v7x: 64 MiB physical / 32 MiB scoped default; v5e: 16 MiB scoped default).
_VMEM_BLOCK_BUDGET_BYTES = 4 * 1024 * 1024

# Minimum number of grid steps when there are enough rows: >= 2 per v7x
# TensorCore so the "parallel" axis can shard across megacore and the DMA
# pipeline has something to overlap with.
_MIN_GRID_STEPS = 4


def _vmem_capacity_bytes():
    try:
        return int(pltpu.get_tpu_info().vmem_capacity_bytes)
    except Exception:
        return 64 * 1024 * 1024   # conservative: v7x per-TensorCore VMEM


def cyclic_pad_1d(x, n):
    """Cyclic pad of width n on each side of the last axis of a (N, C, L) array."""
    N, C, L = x.shape
    n = int(n)
    assert 0 < n <= L, "pad width must be in (0, L]"
    out_L = L + 2 * n
    R = N * C

    itemsize = jnp.dtype(x.dtype).itemsize
    # Sublane packing tile for this dtype: 8 (f32) / 16 (bf16) / 32 (int8).
    sublane = max(8, 32 // itemsize)
    # Real per-row VMEM footprint of a block row is lane-padded to 128.
    lane_L = _round_up(L, 128)
    lane_out = _round_up(out_L, 128)
    # Double-buffered input block + output block, per block row.
    bytes_per_row = 2 * (lane_L + lane_out) * itemsize

    max_rows = max(sublane,
                   (_VMEM_BLOCK_BUDGET_BYTES // bytes_per_row) // sublane * sublane)

    if R >= _MIN_GRID_STEPS * sublane:
        # Enough rows: force >= _MIN_GRID_STEPS steps even if R fits one block.
        tr_steps = max(sublane,
                       (pl.cdiv(R, _MIN_GRID_STEPS) // sublane) * sublane)
        tr = min(max_rows, tr_steps)
    else:
        # Tiny problem: full-extent row block (always a legal block dim), or a
        # VMEM-capped sublane-multiple tile if even that is too big (huge L).
        tr = R if R <= max_rows else max_rows
    grid_r = pl.cdiv(R, tr)

    # Large-L fallback: if the chosen block pair still exceeds the most
    # conservative scoped-VMEM default, raise the limit explicitly (bounded by
    # this generation's physical VMEM) instead of failing to compile.
    block_pair_bytes = 2 * tr * (lane_L + lane_out) * itemsize
    vmem_limit = None
    if block_pair_bytes > 12 * 1024 * 1024:
        cap = _vmem_capacity_bytes()
        vmem_limit = min(block_pair_bytes * 5 // 4 + (1 << 20), cap - (2 << 20))
        # TODO(synk): for L so large that even sublane-height blocks exceed
        # physical VMEM, tile the L axis too (aligned 128-lane body chunks
        # with seam handling); not needed for realistic CyclicPad1d sizes.

    xf = x.reshape(R, L)   # free reshape: (N, C, L) -> (N*C, L)

    kernel = functools.partial(_cyclic_pad_kernel, n, L)

    out = pl.pallas_call(
        kernel,
        out_shape=jax.ShapeDtypeStruct((R, out_L), x.dtype),
        grid_spec=pltpu.PrefetchScalarGridSpec(
            num_scalar_prefetch=0,
            grid=(grid_r,),
            in_specs=[pl.BlockSpec((tr, L), lambda r: (r, 0))],
            out_specs=pl.BlockSpec((tr, out_L), lambda r: (r, 0)),
        ),
        compiler_params=pltpu.CompilerParams(
            dimension_semantics=("parallel",),
            vmem_limit_bytes=vmem_limit,
        ),
    )(xf)

    return out.reshape(N, C, out_L)


def cyclic_pad_1d_ref(x, n):
    # Pure-JAX reference mirroring the PyTorch forward.
    return jnp.concatenate([x[:, :, -n:], x, x[:, :, :n]], axis=2)


if __name__ == "__main__":
    key = jax.random.PRNGKey(0)

    # Small shape consistent with the module: (N, C, L) = (2, 4, 16), n = 3.
    N, C, L = 2, 4, 16
    n = 3
    x = jax.random.normal(key, (N, C, L), dtype=jnp.float32)
    out = jax.block_until_ready(cyclic_pad_1d(x, n))
    ref = cyclic_pad_1d_ref(x, n)
    assert out.shape == (N, C, L + 2 * n), out.shape
    assert jnp.array_equal(out, ref), "mismatch vs reference (small case)"

    # Second case exercising the multi-block (grid_r >= 4) path and a
    # non-multiple-of-128 L with a different dtype.
    key2 = jax.random.PRNGKey(0)
    N2, C2, L2, n2 = 4, 64, 200, 5
    x2 = jax.random.normal(key2, (N2, C2, L2), dtype=jnp.bfloat16)
    out2 = jax.block_until_ready(cyclic_pad_1d(x2, n2))
    ref2 = cyclic_pad_1d_ref(x2, n2)
    assert out2.shape == (N2, C2, L2 + 2 * n2), out2.shape
    assert jnp.array_equal(out2, ref2), "mismatch vs reference (tiled case)"

    print("KERNEL_OK")
</pallas_src>

<mosaic_0001>
module attributes {stable_mosaic.version = 11 : i64} {
  func.func @_cyclic_pad_kernel(%arg0: i32, %arg1: memref<8x16xf32, #tpu.memory_space<vmem>>, %arg2: memref<8x22xf32, #tpu.memory_space<vmem>>) attributes {dimension_semantics = [#tpu.dimension_semantics<parallel>], iteration_bounds = array<i64: 1>, scalar_prefetch = 0 : i64, scratch_operands = 0 : i64, tpu.core_type = #tpu.core_type<tc>, window_params = [{transform_indices = @transform_0, window_bounds = array<i64: 8, 16>}, {transform_indices = @transform_1, window_bounds = array<i64: 8, 22>}]} {
    %c0 = arith.constant 0 : index
    %c0_0 = arith.constant 0 : index
    %0 = vector.load %arg1[%c0, %c0_0] : memref<8x16xf32, #tpu.memory_space<vmem>>, vector<8x16xf32>
    %c0_1 = arith.constant 0 : index
    %c3 = arith.constant 3 : index
    %1 = vector.load %arg2[%c0_1, %c3] : memref<8x22xf32, #tpu.memory_space<vmem>>, vector<8x16xf32>
    tpu.vector_store %arg2[%c0_1, %c3], %0 {strides = array<i32>} : memref<8x22xf32, #tpu.memory_space<vmem>>, vector<8x16xf32>,
    %c0_2 = arith.constant 0 : index
    %c13 = arith.constant 13 : index
    %2 = vector.load %arg1[%c0_2, %c13] : memref<8x16xf32, #tpu.memory_space<vmem>>, vector<8x3xf32>
    %c0_3 = arith.constant 0 : index
    %c0_4 = arith.constant 0 : index
    %3 = vector.load %arg2[%c0_3, %c0_4] : memref<8x22xf32, #tpu.memory_space<vmem>>, vector<8x3xf32>
    tpu.vector_store %arg2[%c0_3, %c0_4], %2 {strides = array<i32>} : memref<8x22xf32, #tpu.memory_space<vmem>>, vector<8x3xf32>,
    %c0_5 = arith.constant 0 : index
    %c0_6 = arith.constant 0 : index
    %4 = vector.load %arg1[%c0_5, %c0_6] : memref<8x16xf32, #tpu.memory_space<vmem>>, vector<8x3xf32>
    %c0_7 = arith.constant 0 : index
    %c19 = arith.constant 19 : index
    %5 = vector.load %arg2[%c0_7, %c19] : memref<8x22xf32, #tpu.memory_space<vmem>>, vector<8x3xf32>
    tpu.vector_store %arg2[%c0_7, %c19], %4 {strides = array<i32>} : memref<8x22xf32, #tpu.memory_space<vmem>>, vector<8x3xf32>,
    return
  }
  func.func @transform_0(%arg0: i32) -> (i32, i32) {
    %c0_i32 = arith.constant 0 : i32
    %c0_i32_0 = arith.constant 0 : i32
    return %arg0, %c0_i32 : i32, i32
  }
  func.func @transform_1(%arg0: i32) -> (i32, i32) {
    %c0_i32 = arith.constant 0 : i32
    %c0_i32_0 = arith.constant 0 : i32
    return %arg0, %c0_i32 : i32, i32
  }
}

</mosaic_0001>

<llo_original>
// kernel: tpu_custom_call.1
$region0: #{tpu_custom_call.1}
  #allocation0 [shape = 'u32[]', space=smem, size = 0x4, offset = 0x4, fixed_abs, tag = 'smem constant byte address 0x4 - core index']
  #allocation1 [shape = 'u32[72,128]{1,0:T(1,128)}', space=vmem, size = 0x9000, scoped, tag = 'internal scratch']
  %s0 = inlined_call_operand.hbm [shape: f32[8,16], index: 0, kind: input, shape index: {}]
  %s1 = inlined_call_operand.hbm [shape: f32[8,22], index: 1, kind: output, shape index: {}]
  %s2 = sld [smem:[#allocation0]]
  $region18: #{tpu_custom_call.1} parent=0
    _
  %s4 = ssub.s32 1, %s2
  %s5 = scalar_select 0, %s4, %s2
  $region1: #{tpu_custom_call.1} parent=0
    #allocation2 [shape = 'u8[4096]{0}', space=vmem, size = 0x1000, scoped, tag = 'input window, operand 0, single buffered']
    #allocation3 [shape = 's32[1]{0}', space=sflag, size = 0x4, scoped, tag = 'scoped memory for tpu_custom_call.1']
    #allocation4 [shape = 's32[1]{0}', space=sflag, size = 0x4, scoped, tag = 'scoped memory for tpu_custom_call.1']
    #allocation5 [shape = 'u8[4096]{0}', space=vmem, size = 0x1000, scoped, tag = 'output window, operand 0, single buffered']
    %6 = vsyncpa [#allocation3], 0
    %7 = vsyncpa [#allocation4], 0
    // Predicated region
    $region2: #{tpu_custom_call.1} parent=1 // pred_check
      _
    $region3: #{tpu_custom_call.1} parent=1 // pred_check_branch
      %9 = sbr.rel (0) target = $region5
    $region4: #{tpu_custom_call.1} parent=1 // pred_region
      %11 = vsyncadd [#allocation3], 0
      %s13 = sshll.u32 %s0, 4
      %s14 = int_to_ptr.hbm [resolvable:$true] %s13
      %s15 = sshll.u32 [#allocation2], 4
      %s16 = int_to_ptr.vmem [resolvable:$true] %s15
      %18 = dma.hbm_to_vmem [thread:$0]  %s14, 128, %s16, [#allocation3]
    $region5: #{tpu_custom_call.1} parent=1 // pred_fallthru
      _
    // Predicated region
    $region6: #{tpu_custom_call.1} parent=1 // pred_check
      _
    $region7: #{tpu_custom_call.1} parent=1 // pred_check_branch
      %20 = sbr.rel (0) target = $region9
    $region8: #{tpu_custom_call.1} parent=1 // pred_region
      %22 = dma.done [#allocation3], 128
    $region9: #{tpu_custom_call.1} parent=1 // pred_fallthru
      _
    %v23 = vld [vmem:[#allocation2] sm:$0xff]
    %25 = vrot.lane.b32.xlu0 %v23, 3
    %v26 = vpop.permute.xlu0 %25
    %vm28 = vcmask 154648
    %29 = vst.msk [vmem:[#allocation5] sm:$0xff] %vm28, %v26
    %v30 = vld [vmem:[#allocation2] sm:$0xff]
    %32 = vrot.lane.b32.xlu0 %v30, 115
    %v33 = vpop.permute.xlu0 %32
    %vm35 = vcmask 23552
    %36 = vst.msk [vmem:[#allocation5] sm:$0xff] %vm35, %v33
    %v37 = vld [vmem:[#allocation2] sm:$0xff]
    %39 = vrot.lane.b32.xlu0 %v37, 19
    %v40 = vpop.permute.xlu0 %39
    %vm42 = vcmask 179352
    %43 = vst.msk [vmem:[#allocation5] sm:$0xff] %vm42, %v40
    // Predicated region
    $region10: #{tpu_custom_call.1} parent=1 // pred_check
      _
    $region11: #{tpu_custom_call.1} parent=1 // pred_check_branch
      %45 = sbr.rel (0) target = $region13
    $region12: #{tpu_custom_call.1} parent=1 // pred_region
      %47 = vsyncadd [#allocation4], 0
      %s49 = sshll.u32 [#allocation5], 4
      %s50 = int_to_ptr.vmem [resolvable:$true] %s49
      %s51 = sshll.u32 %s1, 4
      %s52 = int_to_ptr.hbm [resolvable:$true] %s51
      %54 = dma.vmem_to_hbm [thread:$0]  %s50, 128, %s52, [#allocation4]
    $region13: #{tpu_custom_call.1} parent=1 // pred_fallthru
      _
    // Predicated region
    $region14: #{tpu_custom_call.1} parent=1 // pred_check
      _
    $region15: #{tpu_custom_call.1} parent=1 // pred_check_branch
      %56 = sbr.rel (0) target = $region17
    $region16: #{tpu_custom_call.1} parent=1 // pred_region
      %58 = dma.done [#allocation4], 128
    $region17: #{tpu_custom_call.1} parent=1 // pred_fallthru
      _
    %59 = vsyncpa [#allocation3], 1
    %60 = vsyncpa [#allocation4], 1

</llo_original>
